<compile_context>
chip_gen: v6e
topology: v6e:2x2x1
jax: 0.10.0
libtpu: 0.0.40
codegen_flags: <defaults>
</compile_context>

<pallas_src>
import jax
import jax.numpy as jnp
import numpy as np
from jax.experimental import pallas as pl
from jax.experimental.pallas import tpu as pltpu


# ------------------------------- kernel --------------------------------------
def moe_kernel(idx_ref, token_ref, rw_ref, rb_ref, w1_ref, b1_ref, w2_ref,
               b2_ref, out_ref):
    del idx_ref                      # only consumed by the index_maps
    j = pl.program_id(0)             # position within the top-k (0 = largest)
    f = pl.program_id(1)             # tile along dim_feedforward
    nf = pl.num_programs(1)

    token = token_ref[...]                                            # (1, Dp) f32

    # ---- init this j's accumulator with the (unscaled) output bias ----------
    @pl.when(f == 0)
    def _init():
        out_ref[0] = b2_ref[0]

    # ---- expert FFN, hidden tile f: relu(x @ W1T[:, f] + b1[f]) @ W2T[f, :] --
    # bf16 weights streamed from HBM; widened in-register -> f32 math/acc.
    h = jnp.dot(token, w1_ref[0].astype(jnp.float32),
                preferred_element_type=jnp.float32) + b1_ref[0]       # (1, TF)
    h = jnp.maximum(h, 0.0)
    out_ref[0] = out_ref[0] + jnp.dot(h, w2_ref[0].astype(jnp.float32),
                                      preferred_element_type=jnp.float32)

    # ---- router (once per j, not per grid step): scale the finished y --------
    @pl.when(f == nf - 1)
    def _finalize():
        logits = jnp.dot(token, rw_ref[...],
                         preferred_element_type=jnp.float32) + rb_ref[...]  # (1, E)
        m = jnp.max(logits, axis=-1, keepdims=True)
        p = jnp.exp(logits - m)
        sm = p / jnp.sum(p, axis=-1, keepdims=True)                   # (1, E)

        top1 = jnp.max(sm, axis=-1, keepdims=True)                    # (1, 1)
        lane = jax.lax.broadcasted_iota(jnp.int32, sm.shape, 1)
        first = jnp.min(jnp.where(sm == top1, lane, jnp.int32(2 ** 30)),
                        axis=-1, keepdims=True)                       # argmax (first occurrence)
        top2 = jnp.max(jnp.where(lane == first, -jnp.inf, sm),
                       axis=-1, keepdims=True)                        # tie-safe 2nd value
        scale = jnp.where(j == 0, top1, top2)                         # (1, 1)
        # scale applied to the final y (= sum_f h_f @ W2_f + b2): matches the
        # reference `values[j] * expert(token)` bit-for-bit in ordering.
        out_ref[0] = out_ref[0] * scale


# ---------------------------- host-side prep ----------------------------------
def _round_up(x, m):
    return ((x + m - 1) // m) * m


# Measured per-step efficiency vs tile size (fraction of HBM roofline).
_F_TILE_EFF = {128: 0.29, 256: 0.63, 384: 0.75, 512: 0.85, 640: 0.85,
               768: 0.86, 896: 0.86}


def _pick_f_tile(fp128, dp, weight_budget_bytes, max_f_tile=1024):
    """Largest useful hidden-dim tile given the VMEM budget for the
    double-buffered bf16 W1+W2 tiles (2 tensors x 2 bufs x dp x f_tile x 2B),
    trading per-step overhead against padding waste."""
    cap = weight_budget_bytes // (2 * 2 * dp * 2)
    cap = max(128, min(max_f_tile, (cap // 128) * 128, fp128))
    best, best_score = 128, -1.0
    for cand in range(128, cap + 1, 128):
        padded = _round_up(fp128, cand)
        score = _F_TILE_EFF.get(cand, 0.86) * (fp128 / padded)
        if score > best_score:
            best, best_score = cand, score
    return best


def prepare_moe_params(router_w, router_b, w1_all, b1_all, w2_all, b2_all, *,
                       weight_vmem_budget_bytes=40 << 20):
    """One-time prep: pre-transpose to (in, out) layout, store the streamed
    expert weights in bf16, and zero-pad lane dims so every tile is dense and
    dim_feedforward is a multiple of the chosen f_tile."""
    num_experts, dim_ff, d_model = w1_all.shape
    dp = max(128, _round_up(d_model, 128))
    fp128 = max(128, _round_up(dim_ff, 128))
    f_tile = _pick_f_tile(fp128, dp, weight_vmem_budget_bytes)
    fp = _round_up(fp128, f_tile)

    # Router stays f32 (tiny, evaluated once per top-k slot).
    rwT = jnp.zeros((dp, num_experts), jnp.float32).at[:d_model].set(router_w.T)
    rb = router_b[None, :].astype(jnp.float32)

    # Expert weights: bf16 storage (halves the HBM stream), biases stay f32.
    w1T = jnp.zeros((num_experts, dp, fp), jnp.bfloat16)
    w1T = w1T.at[:, :d_model, :dim_ff].set(
        jnp.transpose(w1_all, (0, 2, 1)).astype(jnp.bfloat16))
    b1 = jnp.zeros((num_experts, 1, fp), jnp.float32).at[:, 0, :dim_ff].set(b1_all)

    w2T = jnp.zeros((num_experts, fp, dp), jnp.bfloat16)
    w2T = w2T.at[:, :dim_ff, :d_model].set(
        jnp.transpose(w2_all, (0, 2, 1)).astype(jnp.bfloat16))
    b2 = jnp.zeros((num_experts, 1, dp), jnp.float32).at[:, 0, :d_model].set(b2_all)

    return dict(rwT=rwT, rb=rb, w1T=w1T, b1=b1, w2T=w2T, b2=b2,
                num_experts=num_experts, d_model=d_model, dim_ff=dim_ff,
                dp=dp, fp=fp, f_tile=f_tile)


def moe_forward(params, token, idx):
    """token: (d_model,) f32.  idx: (k,) int32 device array of selected experts."""
    dp, fp, f_tile = params["dp"], params["fp"], params["f_tile"]
    d_model = params["d_model"]
    num_experts = params["num_experts"]
    k = int(idx.shape[0])                                   # static (1 or 2)
    assert k in (1, 2), "MoELayer forward only defined for k in {1, 2}"
    if k == 2:
        assert num_experts >= 2, "k=2 requires at least two experts"

    nf = fp // f_tile
    token_p = jnp.zeros((1, dp), jnp.float32).at[0, :d_model].set(token)

    # Explicit VMEM budget: double-buffered bf16 W1+W2 tiles dominate.
    weight_tile_bytes = 2 * 2 * dp * f_tile * 2
    vmem_limit = int(min(60 << 20, max(16 << 20, 2 * weight_tile_bytes)))

    grid_spec = pltpu.PrefetchScalarGridSpec(
        num_scalar_prefetch=1,                              # idx -> SMEM
        grid=(k, nf),
        in_specs=[
            pl.BlockSpec((1, dp), lambda j, f, i_ref: (0, 0)),            # token
            pl.BlockSpec((dp, num_experts), lambda j, f, i_ref: (0, 0)),  # router W^T
            pl.BlockSpec((1, num_experts), lambda j, f, i_ref: (0, 0)),   # router b
            pl.BlockSpec((1, dp, f_tile), lambda j, f, i_ref: (i_ref[j], 0, f)),  # W1^T (bf16)
            pl.BlockSpec((1, 1, f_tile), lambda j, f, i_ref: (i_ref[j], 0, f)),   # b1
            pl.BlockSpec((1, f_tile, dp), lambda j, f, i_ref: (i_ref[j], f, 0)),  # W2^T (bf16)
            pl.BlockSpec((1, 1, dp), lambda j, f, i_ref: (i_ref[j], 0, 0)),       # b2
        ],
        # one VMEM-resident partial row per top-k slot j
        out_specs=pl.BlockSpec((1, 1, dp), lambda j, f, i_ref: (j, 0, 0)),
    )

    out = pl.pallas_call(
        moe_kernel,
        grid_spec=grid_spec,
        out_shape=jax.ShapeDtypeStruct((k, 1, dp), jnp.float32),
        compiler_params=pltpu.CompilerParams(
            dimension_semantics=("parallel", "arbitrary"),  # j across TCs on v7x
            vmem_limit_bytes=vmem_limit),
    )(idx, token_p, params["rwT"], params["rb"],
      params["w1T"], params["b1"], params["w2T"], params["b2"])

    # Tiny XLA add of the k partial expert outputs.
    return jnp.sum(out[:, 0, :], axis=0)[:d_model]


# -------------------- host-side glue (matches _uniform_density / _sample) ----
def uniform_density(key, k, num_experts):
    if k == 1:
        pd = jax.random.uniform(key, (num_experts,))
        return pd / pd.sum()
    pd = jax.random.uniform(key, (num_experts, num_experts))
    pd = jnp.triu(pd, 1)           # keep upper triangle, zero diagonal
    pd = pd + pd.T                 # symmetrize
    return pd / pd.sum()


def sample_experts(key, density, num_experts):
    # TODO(synk): torch.multinomial's exact RNG stream has no JAX equivalent;
    # jax.random.categorical over the same density is used (deterministic key).
    # Result stays on device (int32) -- no host round trip.
    flat = density.reshape(-1)
    flat_idx = jax.random.categorical(key, jnp.log(flat + 1e-30))
    if density.ndim == 1:
        return flat_idx[None].astype(jnp.int32)
    return jnp.stack([flat_idx // num_experts,
                      flat_idx % num_experts]).astype(jnp.int32)


# ---------------- numpy (f64) reference of the MoELayer forward --------------
def moe_ref(token, router_w, router_b, w1_all, b1_all, w2_all, b2_all, indices):
    token = np.asarray(token, np.float64)
    rw = np.asarray(router_w, np.float64)
    rb = np.asarray(router_b, np.float64)
    logits = token @ rw.T + rb
    e = np.exp(logits - logits.max())
    sm = e / e.sum()
    vals = np.sort(sm)[::-1][:len(indices)]      # top-k values, descending
    out = np.zeros_like(token)
    for j, ei in enumerate(indices):
        w1 = np.asarray(w1_all[ei], np.float64)
        b1 = np.asarray(b1_all[ei], np.float64)
        w2 = np.asarray(w2_all[ei], np.float64)
        b2 = np.asarray(b2_all[ei], np.float64)
        h = np.maximum(token @ w1.T + b1, 0.0)
        out = out + vals[j] * (h @ w2.T + b2)
    return out


if __name__ == "__main__":
    d_model = 32
    dim_feedforward = 64
    num_experts = 4
    k = 2

    root = jax.random.PRNGKey(0)
    keys = jax.random.split(root, 10)

    # Router: Linear(d_model -> num_experts), PyTorch (out, in) layout
    router_w = jax.random.normal(keys[0], (num_experts, d_model),
                                 jnp.float32) * (1.0 / np.sqrt(d_model))
    router_b = jax.random.normal(keys[1], (num_experts,), jnp.float32) * 0.1

    # Experts: ffn1 Linear(d_model -> dim_ff), ffn2 Linear(dim_ff -> d_model)
    w1_all = jax.random.normal(keys[2], (num_experts, dim_feedforward, d_model),
                               jnp.float32) * (1.0 / np.sqrt(d_model))
    b1_all = jax.random.normal(keys[3], (num_experts, dim_feedforward),
                               jnp.float32) * 0.1
    w2_all = jax.random.normal(keys[4], (num_experts, d_model, dim_feedforward),
                               jnp.float32) * (1.0 / np.sqrt(dim_feedforward))
    b2_all = jax.random.normal(keys[5], (num_experts, d_model),
                               jnp.float32) * 0.1

    # Input token (single token vector, as the forward semantics require)
    token = jax.random.normal(keys[6], (d_model,), jnp.float32)

    # Density built at __init__ time + expert sampling at forward time
    density = uniform_density(keys[7], k, num_experts)
    idx = sample_experts(keys[8], density, num_experts)     # device int32 (k,)

    params = prepare_moe_params(router_w, router_b,
                                w1_all, b1_all, w2_all, b2_all)
    out = moe_forward(params, token, idx)
    out = jax.block_until_ready(out)

    # ---- correctness check (host indices used only in the test harness) -----
    # The bf16 storage of the expert weights is part of the kernel's
    # parameterization, so the reference uses the same bf16-rounded weights.
    indices = [int(i) for i in np.asarray(idx)]
    w1_q = np.asarray(w1_all.astype(jnp.bfloat16).astype(jnp.float32))
    w2_q = np.asarray(w2_all.astype(jnp.bfloat16).astype(jnp.float32))
    ref = moe_ref(token, router_w, router_b,
                  w1_q, b1_all, w2_q, b2_all, indices)
    np.testing.assert_allclose(np.asarray(out), ref, rtol=1e-4, atol=1e-4)
    print("KERNEL_OK")
</pallas_src>

<mosaic_0001>
module attributes {stable_mosaic.version = 11 : i64} {
  func.func @moe_kernel(%arg0: i32, %arg1: i32, %arg2: memref<2xi32, #tpu.memory_space<smem>>, %arg3: memref<1x128xf32, #tpu.memory_space<vmem>>, %arg4: memref<128x4xf32, #tpu.memory_space<vmem>>, %arg5: memref<1x4xf32, #tpu.memory_space<vmem>>, %arg6: memref<1x128x128xbf16, #tpu.memory_space<vmem>>, %arg7: memref<1x1x128xf32, #tpu.memory_space<vmem>>, %arg8: memref<1x128x128xbf16, #tpu.memory_space<vmem>>, %arg9: memref<1x1x128xf32, #tpu.memory_space<vmem>>, %arg10: memref<1x1x128xf32, #tpu.memory_space<vmem>>) attributes {dimension_semantics = [#tpu.dimension_semantics<parallel>, #tpu.dimension_semantics<arbitrary>], iteration_bounds = array<i64: 2, 1>, scalar_prefetch = 1 : i64, scratch_operands = 0 : i64, tpu.core_type = #tpu.core_type<tc>, window_params = [{pipeline_mode = #tpu.pipeline_mode<synchronous>, transform_indices = @transform_0, window_bounds = array<i64: 1, 128>}, {pipeline_mode = #tpu.pipeline_mode<synchronous>, transform_indices = @transform_1, window_bounds = array<i64: 128, 4>}, {pipeline_mode = #tpu.pipeline_mode<synchronous>, transform_indices = @transform_2, window_bounds = array<i64: 1, 4>}, {transform_indices = @transform_3, window_bounds = array<i64: 1, 128, 128>}, {transform_indices = @transform_4, window_bounds = array<i64: 1, 1, 128>}, {transform_indices = @transform_5, window_bounds = array<i64: 1, 128, 128>}, {transform_indices = @transform_6, window_bounds = array<i64: 1, 1, 128>}, {transform_indices = @transform_7, window_bounds = array<i64: 1, 1, 128>}]} {
    %c0 = arith.constant 0 : index
    %c0_0 = arith.constant 0 : index
    %0 = vector.load %arg3[%c0, %c0_0] : memref<1x128xf32, #tpu.memory_space<vmem>>, vector<1x128xf32>
    %c0_i32 = arith.constant 0 : i32
    %1 = arith.cmpi eq, %arg1, %c0_i32 : i32
    %2 = arith.extui %1 : i1 to i32
    %c0_i32_1 = arith.constant 0 : i32
    %3 = arith.cmpi ne, %2, %c0_i32_1 : i32
    scf.if %3 {
      %c0_21 = arith.constant 0 : index
      %c0_22 = arith.constant 0 : index
      %c0_23 = arith.constant 0 : index
      %26 = vector.load %arg9[%c0_21, %c0_22, %c0_23] : memref<1x1x128xf32, #tpu.memory_space<vmem>>, vector<1x1x128xf32>
      %27 = vector.shape_cast %26 : vector<1x1x128xf32> to vector<1x128xf32>
      %c0_24 = arith.constant 0 : index
      %c0_25 = arith.constant 0 : index
      %c0_26 = arith.constant 0 : index
      %28 = vector.load %arg10[%c0_24, %c0_25, %c0_26] : memref<1x1x128xf32, #tpu.memory_space<vmem>>, vector<1x1x128xf32>
      %29 = vector.shape_cast %28 : vector<1x1x128xf32> to vector<1x128xf32>
      %30 = vector.shape_cast %27 : vector<1x128xf32> to vector<1x1x128xf32>
      tpu.vector_store %arg10[%c0_24, %c0_25, %c0_26], %30 {strides = array<i32>} : memref<1x1x128xf32, #tpu.memory_space<vmem>>, vector<1x1x128xf32>,
    } else {
    }
    %c0_2 = arith.constant 0 : index
    %c0_3 = arith.constant 0 : index
    %c0_4 = arith.constant 0 : index
    %4 = vector.load %arg6[%c0_2, %c0_3, %c0_4] : memref<1x128x128xbf16, #tpu.memory_space<vmem>>, vector<1x128x128xbf16>
    %5 = vector.shape_cast %4 : vector<1x128x128xbf16> to vector<128x128xbf16>
    %6 = arith.extf %5 : vector<128x128xbf16> to vector<128x128xf32>
    %cst = arith.constant dense<0.000000e+00> : vector<1x128xf32>
    %7 = tpu.matmul %0, %6, %cst {dimension_numbers = #tpu.dot_dimension_numbers<[1], [0], [0], [1], [0, 0, 1, 1], [], []>} : vector<1x128xf32>, vector<128x128xf32>, vector<1x128xf32> -> vector<1x128xf32>
    %c0_5 = arith.constant 0 : index
    %c0_6 = arith.constant 0 : index
    %c0_7 = arith.constant 0 : index
    %8 = vector.load %arg7[%c0_5, %c0_6, %c0_7] : memref<1x1x128xf32, #tpu.memory_space<vmem>>, vector<1x1x128xf32>
    %9 = vector.shape_cast %8 : vector<1x1x128xf32> to vector<1x128xf32>
    %10 = arith.addf %7, %9 : vector<1x128xf32>
    %cst_8 = arith.constant 0.000000e+00 : f32
    %11 = vector.broadcast %cst_8 : f32 to vector<1x128xf32>
    %12 = arith.maximumf %10, %11 : vector<1x128xf32>
    %c0_9 = arith.constant 0 : index
    %c0_10 = arith.constant 0 : index
    %c0_11 = arith.constant 0 : index
    %13 = vector.load %arg10[%c0_9, %c0_10, %c0_11] : memref<1x1x128xf32, #tpu.memory_space<vmem>>, vector<1x1x128xf32>
    %14 = vector.shape_cast %13 : vector<1x1x128xf32> to vector<1x128xf32>
    %c0_12 = arith.constant 0 : index
    %c0_13 = arith.constant 0 : index
    %c0_14 = arith.constant 0 : index
    %15 = vector.load %arg8[%c0_12, %c0_13, %c0_14] : memref<1x128x128xbf16, #tpu.memory_space<vmem>>, vector<1x128x128xbf16>
    %16 = vector.shape_cast %15 : vector<1x128x128xbf16> to vector<128x128xbf16>
    %17 = arith.extf %16 : vector<128x128xbf16> to vector<128x128xf32>
    %cst_15 = arith.constant dense<0.000000e+00> : vector<1x128xf32>
    %18 = tpu.matmul %12, %17, %cst_15 {dimension_numbers = #tpu.dot_dimension_numbers<[1], [0], [0], [1], [0, 0, 1, 1], [], []>} : vector<1x128xf32>, vector<128x128xf32>, vector<1x128xf32> -> vector<1x128xf32>
    %19 = arith.addf %14, %18 : vector<1x128xf32>
    %c0_16 = arith.constant 0 : index
    %c0_17 = arith.constant 0 : index
    %c0_18 = arith.constant 0 : index
    %20 = vector.load %arg10[%c0_16, %c0_17, %c0_18] : memref<1x1x128xf32, #tpu.memory_space<vmem>>, vector<1x1x128xf32>
    %21 = vector.shape_cast %20 : vector<1x1x128xf32> to vector<1x128xf32>
    %22 = vector.shape_cast %19 : vector<1x128xf32> to vector<1x1x128xf32>
    tpu.vector_store %arg10[%c0_16, %c0_17, %c0_18], %22 {strides = array<i32>} : memref<1x1x128xf32, #tpu.memory_space<vmem>>, vector<1x1x128xf32>,
    %c0_i32_19 = arith.constant 0 : i32
    %23 = arith.cmpi eq, %arg1, %c0_i32_19 : i32
    %24 = arith.extui %23 : i1 to i32
    %c0_i32_20 = arith.constant 0 : i32
    %25 = arith.cmpi ne, %24, %c0_i32_20 : i32
    scf.if %25 {
      %c0_21 = arith.constant 0 : index
      %c0_22 = arith.constant 0 : index
      %26 = vector.load %arg4[%c0_21, %c0_22] : memref<128x4xf32, #tpu.memory_space<vmem>>, vector<128x4xf32>
      %cst_23 = arith.constant dense<0.000000e+00> : vector<1x4xf32>
      %27 = tpu.matmul %0, %26, %cst_23 {dimension_numbers = #tpu.dot_dimension_numbers<[1], [0], [0], [1], [0, 0, 1, 1], [], []>} : vector<1x128xf32>, vector<128x4xf32>, vector<1x4xf32> -> vector<1x4xf32>
      %c0_24 = arith.constant 0 : index
      %c0_25 = arith.constant 0 : index
      %28 = vector.load %arg5[%c0_24, %c0_25] : memref<1x4xf32, #tpu.memory_space<vmem>>, vector<1x4xf32>
      %29 = arith.addf %27, %28 : vector<1x4xf32>
      %cst_26 = arith.constant dense<0xFF800000> : vector<1xf32>
      %30 = vector.multi_reduction <maximumf>, %29, %cst_26 [1] : vector<1x4xf32> to vector<1xf32>
      %31 = vector.shape_cast %30 : vector<1xf32> to vector<1x1xf32>
      %32 = vector.broadcast %31 : vector<1x1xf32> to vector<1x4xf32>
      %33 = arith.subf %29, %32 : vector<1x4xf32>
      %34 = math.exp %33 : vector<1x4xf32>
      %cst_27 = arith.constant dense<0.000000e+00> : vector<1xf32>
      %35 = vector.multi_reduction <add>, %34, %cst_27 [1] : vector<1x4xf32> to vector<1xf32>
      %36 = vector.shape_cast %35 : vector<1xf32> to vector<1x1xf32>
      %37 = vector.broadcast %36 : vector<1x1xf32> to vector<1x4xf32>
      %38 = arith.divf %34, %37 : vector<1x4xf32>
      %cst_28 = arith.constant dense<0xFF800000> : vector<1xf32>
      %39 = vector.multi_reduction <maximumf>, %38, %cst_28 [1] : vector<1x4xf32> to vector<1xf32>
      %40 = vector.shape_cast %39 : vector<1xf32> to vector<1x1xf32>
      %41 = tpu.iota {dimensions = array<i32: 1>} : vector<1x4xi32>
      %42 = vector.broadcast %40 : vector<1x1xf32> to vector<1x4xf32>
      %43 = arith.cmpf oeq, %38, %42 : vector<1x4xf32>
      %c1073741824_i32 = arith.constant 1073741824 : i32
      %44 = vector.broadcast %c1073741824_i32 : i32 to vector<1x4xi32>
      %45 = arith.select %43, %41, %44 : vector<1x4xi1>, vector<1x4xi32>
      %cst_29 = arith.constant dense<2147483647> : vector<1xi32>
      %46 = vector.multi_reduction <minsi>, %45, %cst_29 [1] : vector<1x4xi32> to vector<1xi32>
      %47 = vector.shape_cast %46 : vector<1xi32> to vector<1x1xi32>
      %48 = vector.broadcast %47 : vector<1x1xi32> to vector<1x4xi32>
      %49 = arith.cmpi eq, %41, %48 : vector<1x4xi32>
      %cst_30 = arith.constant 0xFF800000 : f32
      %50 = vector.broadcast %cst_30 : f32 to vector<1x4xf32>
      %51 = arith.select %49, %50, %38 : vector<1x4xi1>, vector<1x4xf32>
      %cst_31 = arith.constant dense<0xFF800000> : vector<1xf32>
      %52 = vector.multi_reduction <maximumf>, %51, %cst_31 [1] : vector<1x4xf32> to vector<1xf32>
      %53 = vector.shape_cast %52 : vector<1xf32> to vector<1x1xf32>
      %c0_i32_32 = arith.constant 0 : i32
      %54 = arith.cmpi eq, %arg0, %c0_i32_32 : i32
      %55 = arith.select %54, %40, %53 : vector<1x1xf32>
      %c0_33 = arith.constant 0 : index
      %c0_34 = arith.constant 0 : index
      %c0_35 = arith.constant 0 : index
      %56 = vector.load %arg10[%c0_33, %c0_34, %c0_35] : memref<1x1x128xf32, #tpu.memory_space<vmem>>, vector<1x1x128xf32>
      %57 = vector.shape_cast %56 : vector<1x1x128xf32> to vector<1x128xf32>
      %58 = vector.broadcast %55 : vector<1x1xf32> to vector<1x128xf32>
      %59 = arith.mulf %57, %58 : vector<1x128xf32>
      %c0_36 = arith.constant 0 : index
      %c0_37 = arith.constant 0 : index
      %c0_38 = arith.constant 0 : index
      %60 = vector.load %arg10[%c0_36, %c0_37, %c0_38] : memref<1x1x128xf32, #tpu.memory_space<vmem>>, vector<1x1x128xf32>
      %61 = vector.shape_cast %60 : vector<1x1x128xf32> to vector<1x128xf32>
      %62 = vector.shape_cast %59 : vector<1x128xf32> to vector<1x1x128xf32>
      tpu.vector_store %arg10[%c0_36, %c0_37, %c0_38], %62 {strides = array<i32>} : memref<1x1x128xf32, #tpu.memory_space<vmem>>, vector<1x1x128xf32>,
    } else {
    }
    return
  }
  func.func @transform_0(%arg0: i32, %arg1: i32, %arg2: memref<2xi32, #tpu.memory_space<smem>>) -> (i32, i32) {
    %c0_i32 = arith.constant 0 : i32
    %c0_i32_0 = arith.constant 0 : i32
    %c0_i32_1 = arith.constant 0 : i32
    return %c0_i32, %c0_i32_0 : i32, i32
  }
  func.func @transform_1(%arg0: i32, %arg1: i32, %arg2: memref<2xi32, #tpu.memory_space<smem>>) -> (i32, i32) {
    %c0_i32 = arith.constant 0 : i32
    %c0_i32_0 = arith.constant 0 : i32
    %c0_i32_1 = arith.constant 0 : i32
    return %c0_i32, %c0_i32_0 : i32, i32
  }
  func.func @transform_2(%arg0: i32, %arg1: i32, %arg2: memref<2xi32, #tpu.memory_space<smem>>) -> (i32, i32) {
    %c0_i32 = arith.constant 0 : i32
    %c0_i32_0 = arith.constant 0 : i32
    %c0_i32_1 = arith.constant 0 : i32
    return %c0_i32, %c0_i32_0 : i32, i32
  }
  func.func @transform_3(%arg0: i32, %arg1: i32, %arg2: memref<2xi32, #tpu.memory_space<smem>>) -> (i32, i32, i32) {
    %0 = arith.index_cast %arg0 : i32 to index
    %1 = memref.load %arg2[%0] : memref<2xi32, #tpu.memory_space<smem>>
    %c0_i32 = arith.constant 0 : i32
    %c0_i32_0 = arith.constant 0 : i32
    return %1, %c0_i32, %arg1 : i32, i32, i32
  }
  func.func @transform_4(%arg0: i32, %arg1: i32, %arg2: memref<2xi32, #tpu.memory_space<smem>>) -> (i32, i32, i32) {
    %0 = arith.index_cast %arg0 : i32 to index
    %1 = memref.load %arg2[%0] : memref<2xi32, #tpu.memory_space<smem>>
    %c0_i32 = arith.constant 0 : i32
    %c0_i32_0 = arith.constant 0 : i32
    return %1, %c0_i32, %arg1 : i32, i32, i32
  }
  func.func @transform_5(%arg0: i32, %arg1: i32, %arg2: memref<2xi32, #tpu.memory_space<smem>>) -> (i32, i32, i32) {
    %0 = arith.index_cast %arg0 : i32 to index
    %1 = memref.load %arg2[%0] : memref<2xi32, #tpu.memory_space<smem>>
    %c0_i32 = arith.constant 0 : i32
    %c0_i32_0 = arith.constant 0 : i32
    return %1, %arg1, %c0_i32 : i32, i32, i32
  }
  func.func @transform_6(%arg0: i32, %arg1: i32, %arg2: memref<2xi32, #tpu.memory_space<smem>>) -> (i32, i32, i32) {
    %0 = arith.index_cast %arg0 : i32 to index
    %1 = memref.load %arg2[%0] : memref<2xi32, #tpu.memory_space<smem>>
    %c0_i32 = arith.constant 0 : i32
    %c0_i32_0 = arith.constant 0 : i32
    %c0_i32_1 = arith.constant 0 : i32
    return %1, %c0_i32, %c0_i32_0 : i32, i32, i32
  }
  func.func @transform_7(%arg0: i32, %arg1: i32, %arg2: memref<2xi32, #tpu.memory_space<smem>>) -> (i32, i32, i32) {
    %c0_i32 = arith.constant 0 : i32
    %c0_i32_0 = arith.constant 0 : i32
    %c0_i32_1 = arith.constant 0 : i32
    return %arg0, %c0_i32, %c0_i32_0 : i32, i32, i32
  }
}

</mosaic_0001>

<llo_original>
// kernel: tpu_custom_call.1
$region0: #{tpu_custom_call.1}
  #allocation0 [shape = 'u32[]', space=smem, size = 0x4, offset = 0x4, fixed_abs, tag = 'smem constant byte address 0x4 - core index']
  #allocation1 [shape = 'u32[144,128]{1,0:T(1,128)}', space=vmem, size = 0x12000, scoped, tag = 'internal scratch']
  #allocation2 [shape = 's32[1]{0}', space=sflag, size = 0x4, scoped, tag = 'scoped memory for tpu_custom_call.1']
  #allocation3 [shape = 'u8[512]{0}', space=smem, size = 0x200, scoped, tag = 'prefetched SMEM operand 0']
  %s0 = inlined_call_operand.vmem [shape: s32[2], index: 0, kind: input, shape index: {}]
  %s1 = inlined_call_operand.vmem [shape: f32[1,128], index: 1, kind: input, shape index: {}]
  %s2 = inlined_call_operand.vmem [shape: f32[128,4], index: 2, kind: input, shape index: {}]
  %s3 = inlined_call_operand.vmem [shape: f32[1,4], index: 3, kind: input, shape index: {}]
  %s4 = inlined_call_operand.hbm [shape: bf16[4,128,128], index: 4, kind: input, shape index: {}]
  %s5 = inlined_call_operand.vmem [shape: f32[4,1,128], index: 5, kind: input, shape index: {}]
  %s6 = inlined_call_operand.hbm [shape: bf16[4,128,128], index: 6, kind: input, shape index: {}]
  %s7 = inlined_call_operand.vmem [shape: f32[4,1,128], index: 7, kind: input, shape index: {}]
  %s8 = inlined_call_operand.hbm [shape: f32[2,1,128], index: 8, kind: output, shape index: {}]
  %s9 = sld [smem:[#allocation0]]
  $region77: #{tpu_custom_call.1} parent=0
    _
  %s11 = ssub.s32 1, %s9
  %s12 = scalar_select 0, %s11, %s9
  %s13 = sshll.u32 %s0, 4
  %s14 = int_to_ptr.vmem [resolvable:$true] %s13
  %16 = dma.vmem_to_smem %s14, 16, [#allocation3], [#allocation2]
  %17 = dma.done [#allocation2], 16
  %18 = sfence
  $region1: #{tpu_custom_call.1} parent=0
    #allocation4 [shape = 'u8[65536]{0}', space=vmem, size = 0x10000, scoped, tag = 'input window, operand 4']
    #allocation5 [shape = 's32[2]{0}', space=sflag, size = 0x8, scoped, tag = 'scoped memory for tpu_custom_call.1']
    #allocation6 [shape = 's32[2]{0}', space=sflag, size = 0x8, scoped, tag = 'scoped memory for tpu_custom_call.1']
    #allocation7 [shape = 'u8[65536]{0}', space=vmem, size = 0x10000, scoped, tag = 'input window, operand 6']
    #allocation8 [shape = 's32[2]{0}', space=sflag, size = 0x8, scoped, tag = 'scoped memory for tpu_custom_call.1']
    #allocation9 [shape = 'u8[1024]{0}', space=vmem, size = 0x400, scoped, tag = 'output window, operand 0']
    %19 = vsyncpa [#allocation5], 0
    %s20 = scalar_lea.sflag [#allocation5], 1
    %21 = vsyncpa %s20, 0
    %22 = vsyncpa [#allocation8], 0
    %s23 = scalar_lea.sflag [#allocation8], 1
    %24 = vsyncpa %s23, 0
    %25 = vsyncpa [#allocation6], 0
    %s26 = scalar_lea.sflag [#allocation6], 1
    %27 = vsyncpa %s26, 0
    loop: start=0, step=1, limit=4
    $region2: #{tpu_custom_call.1} parent=1 // loop_pre_header
      _
    $region3: #{tpu_custom_call.1} parent=1 // loop_header
      %s29 = sphi 0, %s33
      %p30 = scmp.ge.s32.totalorder %s29, 4
      %s36 = sphi 0, %s48
      %s37 = sphi 0, %s44
      %s38 = sphi 0, %s36
      %s39 = sphi 0, %s37
      %s40 = sphi 0, %s38
      %s41 = sphi 0, %s39
      %s49 = sphi 0, %s49
      %s51 = sphi 0, %s49
      %s52 = sphi 0, %s51
      %s66 = sphi 0, %s52
      %s70 = sphi 0, %s70
      %s72 = sphi 0, %s70
      %s73 = sphi 0, %s72
      %s87 = sphi 0, %s73
      %s91 = sphi 0, %s91
      %s93 = sphi 0, %s91
      %s94 = sphi 0, %s93
      %s108 = sphi 0, %s94
      %s118 = sphi 0, %s120
      %s121 = sphi 0, %s118
      %s122 = sphi 0, %s121
      %s138 = sphi 0, %s122
      %s148 = sphi 0, %s150
      %s151 = sphi 0, %s148
      %s152 = sphi 0, %s151
      %s168 = sphi 0, %s152
      %s178 = sphi 0, %s180
      %s181 = sphi 0, %s178
      %s182 = sphi 0, %s181
      %s198 = sphi 0, %s182
      %s206 = sphi 0, %s208
      %s209 = sphi 0, %s206
      %s210 = sphi 0, %s209
      %s226 = sphi 0, %s210
      %s232 = sphi 0, %s234
      %s235 = sphi 0, %s232
      %s236 = sphi 0, %s235
      %s252 = sphi 0, %s236
    $region4: #{tpu_custom_call.1} parent=1 // loop_header_branch
      %32 = sbr.rel (%p30) target = $region8
    $region5: #{tpu_custom_call.1} parent=1 // loop_body
      %s34 = ssub.s32 %s29, 1
      %s35 = ssub.s32 %s29, 2
      %s42 = sadd.s32 1, %s37
      %p43 = scmp.ge.s32.totalorder %s42, 1
      %s44 = scalar_select %p43, 0, %s42
      %s45 = sadd.s32 1, %s36
      %s46 = scalar_select %p43, %s45, %s36
      %p47 = scmp.ge.s32.totalorder %s46, 2
      %s48 = scalar_select %p47, 0, %s46
      %s50 = sadd.s32 %s49, 1
      %p53 = scmp.eq.s32.totalorder %s29, 1
      %p54 = scmp.ne.s32.totalorder %s49, %s51
      %p55 = scmp.eq.s32.totalorder %s29, 0
      %p56 = por %p54, %p55
      %p57 = scmp.ne.s32.totalorder %s49, %s51
      %p58 = scmp.eq.s32.totalorder %s34, 1
      %p59 = por %p57, %p58
      %p60 = scmp.ne.s32.totalorder %s51, %s52
      %p61 = scmp.eq.s32.totalorder %s34, 0
      %p62 = por %p60, %p61
      %p63 = scmp.ne.s32.totalorder %s51, %s52
      %p64 = scmp.eq.s32.totalorder %s35, 1
      %p65 = por %p63, %p64
      %p67 = scmp.ne.s32.totalorder %s52, %s66
      %p68 = scmp.eq.s32.totalorder %s35, 0
      %p69 = por %p67, %p68
      %s71 = sadd.s32 %s70, 1
      %p74 = scmp.eq.s32.totalorder %s29, 1
      %p75 = scmp.ne.s32.totalorder %s70, %s72
      %p76 = scmp.eq.s32.totalorder %s29, 0
      %p77 = por %p75, %p76
      %p78 = scmp.ne.s32.totalorder %s70, %s72
      %p79 = scmp.eq.s32.totalorder %s34, 1
      %p80 = por %p78, %p79
      %p81 = scmp.ne.s32.totalorder %s72, %s73
      %p82 = scmp.eq.s32.totalorder %s34, 0
      %p83 = por %p81, %p82
      %p84 = scmp.ne.s32.totalorder %s72, %s73
      %p85 = scmp.eq.s32.totalorder %s35, 1
      %p86 = por %p84, %p85
      %p88 = scmp.ne.s32.totalorder %s73, %s87
      %p89 = scmp.eq.s32.totalorder %s35, 0
      %p90 = por %p88, %p89
      %s92 = sadd.s32 %s91, 1
      %p95 = scmp.eq.s32.totalorder %s29, 1
      %p96 = scmp.ne.s32.totalorder %s91, %s93
      %p97 = scmp.eq.s32.totalorder %s29, 0
      %p98 = por %p96, %p97
      %p99 = scmp.ne.s32.totalorder %s91, %s93
      %p100 = scmp.eq.s32.totalorder %s34, 1
      %p101 = por %p99, %p100
      %p102 = scmp.ne.s32.totalorder %s93, %s94
      %p103 = scmp.eq.s32.totalorder %s34, 0
      %p104 = por %p102, %p103
      %p105 = scmp.ne.s32.totalorder %s93, %s94
      %p106 = scmp.eq.s32.totalorder %s35, 1
      %p107 = por %p105, %p106
      %p109 = scmp.ne.s32.totalorder %s94, %s108
      %p110 = scmp.eq.s32.totalorder %s35, 0
      %p111 = por %p109, %p110
      %s112 = sld [smem:[#allocation3 + %s36]]
      %s113 = sld [smem:[#allocation3 + %s48]]
      %s114 = ssub.s32 %s112, %s113
      %s115 = ssub.s32 %s37, %s44
      %s116 = sor.u32 %s114, %s115
      %p117 = scmp.eq.s32.totalorder %s116, 0
      %s119 = sadd.s32 %s118, 1
      %s120 = scalar_select %p117, %s118, %s119
      %p123 = pneg %p117
      %p124 = scmp.eq.s32.totalorder %s29, 1
      %p125 = por %p123, %p124
      %p126 = scmp.ne.s32.totalorder %s118, %s121
      %p127 = scmp.eq.s32.totalorder %s29, 0
      %p128 = por %p126, %p127
      %p129 = scmp.ne.s32.totalorder %s118, %s121
      %p130 = scmp.eq.s32.totalorder %s34, 1
      %p131 = por %p129, %p130
      %p132 = scmp.ne.s32.totalorder %s121, %s122
      %p133 = scmp.eq.s32.totalorder %s34, 0
      %p134 = por %p132, %p133
      %p135 = scmp.ne.s32.totalorder %s121, %s122
      %p136 = scmp.eq.s32.totalorder %s35, 1
      %p137 = por %p135, %p136
      %p139 = scmp.ne.s32.totalorder %s122, %s138
      %p140 = scmp.eq.s32.totalorder %s35, 0
      %p141 = por %p139, %p140
      %s142 = sld [smem:[#allocation3 + %s36]]
      %s143 = sld [smem:[#allocation3 + %s48]]
      %s144 = ssub.s32 %s142, %s143
      %s145 = ssub.s32 %s37, %s44
      %s146 = sor.u32 %s144, %s145
      %p147 = scmp.eq.s32.totalorder %s146, 0
      %s149 = sadd.s32 %s148, 1
      %s150 = scalar_select %p147, %s148, %s149
      %p153 = pneg %p147
      %p154 = scmp.eq.s32.totalorder %s29, 1
      %p155 = por %p153, %p154
      %p156 = scmp.ne.s32.totalorder %s148, %s151
      %p157 = scmp.eq.s32.totalorder %s29, 0
      %p158 = por %p156, %p157
      %p159 = scmp.ne.s32.totalorder %s148, %s151
      %p160 = scmp.eq.s32.totalorder %s34, 1
      %p161 = por %p159, %p160
      %p162 = scmp.ne.s32.totalorder %s151, %s152
      %p163 = scmp.eq.s32.totalorder %s34, 0
      %p164 = por %p162, %p163
      %p165 = scmp.ne.s32.totalorder %s151, %s152
      %p166 = scmp.eq.s32.totalorder %s35, 1
      %p167 = por %p165, %p166
      %p169 = scmp.ne.s32.totalorder %s152, %s168
      %p170 = scmp.eq.s32.totalorder %s35, 0
      %p171 = por %p169, %p170
      %s172 = sld [smem:[#allocation3 + %s36]]
      %s173 = sld [smem:[#allocation3 + %s48]]
      %s174 = ssub.s32 %s172, %s173
      %s175 = ssub.s32 %s37, %s44
      %s176 = sor.u32 %s174, %s175
      %p177 = scmp.eq.s32.totalorder %s176, 0
      %s179 = sadd.s32 %s178, 1
      %s180 = scalar_select %p177, %s178, %s179
      %p183 = pneg %p177
      %p184 = scmp.eq.s32.totalorder %s29, 1
      %p185 = por %p183, %p184
      %p186 = scmp.ne.s32.totalorder %s178, %s181
      %p187 = scmp.eq.s32.totalorder %s29, 0
      %p188 = por %p186, %p187
      %p189 = scmp.ne.s32.totalorder %s178, %s181
      %p190 = scmp.eq.s32.totalorder %s34, 1
      %p191 = por %p189, %p190
      %p192 = scmp.ne.s32.totalorder %s181, %s182
      %p193 = scmp.eq.s32.totalorder %s34, 0
      %p194 = por %p192, %p193
      %p195 = scmp.ne.s32.totalorder %s181, %s182
      %p196 = scmp.eq.s32.totalorder %s35, 1
      %p197 = por %p195, %p196
      %p199 = scmp.ne.s32.totalorder %s182, %s198
      %p200 = scmp.eq.s32.totalorder %s35, 0
      %p201 = por %p199, %p200
      %s202 = sld [smem:[#allocation3 + %s36]]
      %s203 = sld [smem:[#allocation3 + %s48]]
      %s204 = ssub.s32 %s202, %s203
      %p205 = scmp.eq.s32.totalorder %s204, 0
      %s207 = sadd.s32 %s206, 1
      %s208 = scalar_select %p205, %s206, %s207
      %p211 = pneg %p205
      %p212 = scmp.eq.s32.totalorder %s29, 1
      %p213 = por %p211, %p212
      %p214 = scmp.ne.s32.totalorder %s206, %s209
      %p215 = scmp.eq.s32.totalorder %s29, 0
      %p216 = por %p214, %p215
      %p217 = scmp.ne.s32.totalorder %s206, %s209
      %p218 = scmp.eq.s32.totalorder %s34, 1
      %p219 = por %p217, %p218
      %p220 = scmp.ne.s32.totalorder %s209, %s210
      %p221 = scmp.eq.s32.totalorder %s34, 0
      %p222 = por %p220, %p221
      %p223 = scmp.ne.s32.totalorder %s209, %s210
      %p224 = scmp.eq.s32.totalorder %s35, 1
      %p225 = por %p223, %p224
      %p227 = scmp.ne.s32.totalorder %s210, %s226
      %p228 = scmp.eq.s32.totalorder %s35, 0
      %p229 = por %p227, %p228
      %s230 = ssub.s32 %s36, %s48
      %p231 = scmp.eq.s32.totalorder %s230, 0
      %s233 = sadd.s32 %s232, 1
      %s234 = scalar_select %p231, %s232, %s233
      %p237 = pneg %p231
      %p238 = scmp.eq.s32.totalorder %s29, 1
      %p239 = por %p237, %p238
      %p240 = scmp.ne.s32.totalorder %s232, %s235
      %p241 = scmp.eq.s32.totalorder %s29, 0
      %p242 = por %p240, %p241
      %p243 = scmp.ne.s32.totalorder %s232, %s235
      %p244 = scmp.eq.s32.totalorder %s34, 1
      %p245 = por %p243, %p244
      %p246 = scmp.ne.s32.totalorder %s235, %s236
      %p247 = scmp.eq.s32.totalorder %s34, 0
      %p248 = por %p246, %p247
      %p249 = scmp.ne.s32.totalorder %s235, %s236
      %p250 = scmp.eq.s32.totalorder %s35, 1
      %p251 = por %p249, %p250
      %p253 = scmp.ne.s32.totalorder %s236, %s252
      %p254 = scmp.eq.s32.totalorder %s35, 0
      %p255 = por %p253, %p254
      %p256 = scmp.le.s32.totalorder 1, %s29
      %p257 = scmp.lt.s32.totalorder %s29, 3
      %p258 = pnand %p256, %p257
      %p259 = pneg %p258
      // Predicated region
      $region9: #{tpu_custom_call.1} parent=5 // pred_check
        _
      $region10: #{tpu_custom_call.1} parent=5 // pred_check_branch
        %261 = sbr.rel (%p258) target = $region12
      $region11: #{tpu_custom_call.1} parent=5 // pred_region
        %s262 = ssub.s32 %s29, 1
        // Predicated region
        $region13: #{tpu_custom_call.1} parent=11 // pred_check
          %p263 = pneg %p62
        $region14: #{tpu_custom_call.1} parent=11 // pred_check_branch
          %265 = sbr.rel (%p263) target = $region16
        $region15: #{tpu_custom_call.1} parent=11 // pred_region
          _
        $region16: #{tpu_custom_call.1} parent=11 // pred_fallthru
          _
        // Predicated region
        $region17: #{tpu_custom_call.1} parent=11 // pred_check
          %p266 = pneg %p83
        $region18: #{tpu_custom_call.1} parent=11 // pred_check_branch
          %268 = sbr.rel (%p266) target = $region20
        $region19: #{tpu_custom_call.1} parent=11 // pred_region
          _
        $region20: #{tpu_custom_call.1} parent=11 // pred_fallthru
          _
        // Predicated region
        $region21: #{tpu_custom_call.1} parent=11 // pred_check
          %p269 = pneg %p104
        $region22: #{tpu_custom_call.1} parent=11 // pred_check_branch
          %271 = sbr.rel (%p269) target = $region24
        $region23: #{tpu_custom_call.1} parent=11 // pred_region
          _
        $region24: #{tpu_custom_call.1} parent=11 // pred_fallthru
          _
      $region12: #{tpu_custom_call.1} parent=5 // pred_fallthru
        _
      %p272 = scmp.lt.s32.totalorder %s29, 2
      // Predicated region
      $region25: #{tpu_custom_call.1} parent=5 // pred_check
        %p273 = pneg %p272
      $region26: #{tpu_custom_call.1} parent=5 // pred_check_branch
        %275 = sbr.rel (%p273) target = $region28
      $region27: #{tpu_custom_call.1} parent=5 // pred_region
        // Predicated region
        $region29: #{tpu_custom_call.1} parent=27 // pred_check
          %p276 = pneg %p128
        $region30: #{tpu_custom_call.1} parent=27 // pred_check_branch
          %278 = sbr.rel (%p276) target = $region32
        $region31: #{tpu_custom_call.1} parent=27 // pred_region
          %s279 = sand.u32 %s118, 1
          %s280 = scalar_lea.sflag [#allocation5], %s279
          %s281 = sand.u32 %s118, 1
          %s282 = smul.addr %s281, 64
          %s283 = scalar_lea.vmem [#allocation4], %s282
          %s284 = sld [smem:[#allocation3 + %s36]]
          %s286 = ssub.s32 1024, 1024
          %287 = vsyncadd %s280, %s286
          %s288 = smul.addr %s284, 16
          %s289 = sadd.s32 %s37, %s288
          %s290 = smul.addr %s289, 64
          %s291 = scalar_lea.hbm %s4, %s290
          %s292 = sshll.u32 %s283, 4
          %s293 = int_to_ptr.vmem [resolvable:$true] %s292
          %298 = dma.hbm_to_vmem [thread:$0]  %s291, 1024, %s293, %s280, 64, 64, 4
        $region32: #{tpu_custom_call.1} parent=27 // pred_fallthru
          _
        // Predicated region
        $region33: #{tpu_custom_call.1} parent=27 // pred_check
          %p299 = pneg %p158
        $region34: #{tpu_custom_call.1} parent=27 // pred_check_branch
          %301 = sbr.rel (%p299) target = $region36
        $region35: #{tpu_custom_call.1} parent=27 // pred_region
          %s302 = sld [smem:[#allocation3 + %s36]]
          %p303 = scmp.lt.s32.totalorder %s302, 3
          %s304 = scalar_select %p303, %s302, 3
          %p305 = scmp.lt.s32.totalorder %s37, 0
          %s306 = scalar_select %p305, %s37, 0
          %s307 = sadd.s32 %s306, %s304
          %s308 = scalar_lea.vmem %s5, %s307
          %s309 = sld [smem:[#allocation3 + %s36]]
        $region36: #{tpu_custom_call.1} parent=27 // pred_fallthru
          _
        // Predicated region
        $region37: #{tpu_custom_call.1} parent=27 // pred_check
          %p310 = pneg %p188
        $region38: #{tpu_custom_call.1} parent=27 // pred_check_branch
          %312 = sbr.rel (%p310) target = $region40
        $region39: #{tpu_custom_call.1} parent=27 // pred_region
          %s313 = sand.u32 %s178, 1
          %s314 = scalar_lea.sflag [#allocation8], %s313
          %s315 = sand.u32 %s178, 1
          %s316 = smul.addr %s315, 64
          %s317 = scalar_lea.vmem [#allocation7], %s316
          %s318 = sld [smem:[#allocation3 + %s36]]
          %s319 = smul.u32 16, %s37
          %s321 = ssub.s32 1024, 1024
          %322 = vsyncadd %s314, %s321
          %s323 = smul.addr %s318, 16
          %s324 = sadd.s32 %s319, %s323
          %s325 = smul.addr %s324, 64
          %s326 = scalar_lea.hbm %s6, %s325
          %s327 = sshll.u32 %s317, 4
          %s328 = int_to_ptr.vmem [resolvable:$true] %s327
          %333 = dma.hbm_to_vmem [thread:$0]  %s326, 1024, %s328, %s314, 64, 64, 4
        $region40: #{tpu_custom_call.1} parent=27 // pred_fallthru
          _
        // Predicated region
        $region41: #{tpu_custom_call.1} parent=27 // pred_check
          %p334 = pneg %p216
        $region42: #{tpu_custom_call.1} parent=27 // pred_check_branch
          %336 = sbr.rel (%p334) target = $region44
        $region43: #{tpu_custom_call.1} parent=27 // pred_region
          %s337 = sld [smem:[#allocation3 + %s36]]
          %p338 = scmp.lt.s32.totalorder %s337, 3
          %s339 = scalar_select %p338, %s337, 3
          %s340 = scalar_lea.vmem %s7, %s339
          %s341 = sld [smem:[#allocation3 + %s36]]
        $region44: #{tpu_custom_call.1} parent=27 // pred_fallthru
          _
      $region28: #{tpu_custom_call.1} parent=5 // pred_fallthru
        _
      %p342 = scmp.le.s32.totalorder 1, %s29
      %p343 = scmp.lt.s32.totalorder %s29, 3
      %p344 = pnand %p342, %p343
      %p345 = pneg %p344
      // Predicated region
      $region45: #{tpu_custom_call.1} parent=5 // pred_check
        _
      $region46: #{tpu_custom_call.1} parent=5 // pred_check_branch
        %347 = sbr.rel (%p344) target = $region48
      $region47: #{tpu_custom_call.1} parent=5 // pred_region
        %s348 = ssub.s32 %s29, 1
        %s349 = sand.u32 %s121, 1
        %s350 = scalar_lea.sflag [#allocation5], %s349
        %s351 = sand.u32 %s121, 1
        %s352 = smul.addr %s351, 64
        %s353 = scalar_lea.vmem [#allocation4], %s352
        // Predicated region
        $region49: #{tpu_custom_call.1} parent=47 // pred_check
          %p354 = pneg %p134
        $region50: #{tpu_custom_call.1} parent=47 // pred_check_branch
          %356 = sbr.rel (%p354) target = $region52
        $region51: #{tpu_custom_call.1} parent=47 // pred_region
          %357 = dma.done %s350, 1024
        $region52: #{tpu_custom_call.1} parent=47 // pred_fallthru
          _
        %s358 = sand.u32 %s181, 1
        %s359 = scalar_lea.sflag [#allocation8], %s358
        %s360 = sand.u32 %s181, 1
        %s361 = smul.addr %s360, 64
        %s362 = scalar_lea.vmem [#allocation7], %s361
        // Predicated region
        $region53: #{tpu_custom_call.1} parent=47 // pred_check
          %p363 = pneg %p194
        $region54: #{tpu_custom_call.1} parent=47 // pred_check_branch
          %365 = sbr.rel (%p363) target = $region56
        $region55: #{tpu_custom_call.1} parent=47 // pred_region
          %366 = dma.done %s359, 1024
        $region56: #{tpu_custom_call.1} parent=47 // pred_fallthru
          _
        %p367 = pneg %p62
        %p368 = pneg %p59
        %p369 = pneg %p83
        %p370 = pneg %p80
        %p371 = pneg %p104
        %p372 = pneg %p101
        %s373 = sand.u32 %s121, 1
        %s374 = scalar_lea.sflag [#allocation5], %s373
        %s375 = sand.u32 %s121, 1
        %s376 = smul.addr %s375, 64
        %s377 = scalar_lea.vmem [#allocation4], %s376
        %p378 = pneg %p134
        %p379 = pneg %p131
        %s380 = sld [smem:[#allocation3 + %s38]]
        %p381 = scmp.lt.s32.totalorder %s380, 3
        %s382 = scalar_select %p381, %s380, 3
        %p383 = scmp.lt.s32.totalorder %s39, 0
        %s384 = scalar_select %p383, %s39, 0
        %s385 = sadd.s32 %s384, %s382
        %s386 = scalar_lea.vmem %s5, %s385
        %p387 = pneg %p164
        %p388 = pneg %p161
        %s389 = sand.u32 %s181, 1
        %s390 = scalar_lea.sflag [#allocation8], %s389
        %s391 = sand.u32 %s181, 1
        %s392 = smul.addr %s391, 64
        %s393 = scalar_lea.vmem [#allocation7], %s392
        %p394 = pneg %p194
        %p395 = pneg %p191
        %s396 = sld [smem:[#allocation3 + %s38]]
        %p397 = scmp.lt.s32.totalorder %s396, 3
        %s398 = scalar_select %p397, %s396, 3
        %s399 = scalar_lea.vmem %s7, %s398
        %p400 = pneg %p222
        %p401 = pneg %p219
        %p402 = pneg %p248
        %p403 = pneg %p245
        %s404 = sand.u32 %s235, 1
        %s405 = scalar_lea.sflag [#allocation6], %s404
        %s406 = sand.u32 %s235, 1
        %s407 = scalar_lea.vmem [#allocation9], %s406
        %s408 = sld [smem:[#allocation3 + %s38]]
        %s409 = sld [smem:[#allocation3 + %s38]]
        %p410 = scmp.lt.s32.totalorder %s409, 3
        %s411 = scalar_select %p410, %s409, 3
        %p412 = scmp.lt.s32.totalorder %s39, 0
        %s413 = scalar_select %p412, %s39, 0
        %s414 = sadd.s32 %s413, %s411
        %s415 = scalar_lea.vmem %s5, %s414
        %s416 = sld [smem:[#allocation3 + %s38]]
        %s417 = sld [smem:[#allocation3 + %s38]]
        %s418 = smul.u32 16, %s39
        %s419 = sld [smem:[#allocation3 + %s38]]
        %p420 = scmp.lt.s32.totalorder %s419, 3
        %s421 = scalar_select %p420, %s419, 3
        %s422 = scalar_lea.vmem %s7, %s421
        %s423 = sld [smem:[#allocation3 + %s38]]
        %v424 = vld [vmem:[%s1] sm:$0x1]
        %p425 = scmp.eq.s32.totalorder %s39, 0
        // Predicated region
        $region57: #{tpu_custom_call.1} parent=47 // pred_check
          %p426 = pneg %p425
        $region58: #{tpu_custom_call.1} parent=47 // pred_check_branch
          %428 = sbr.rel (%p426) target = $region60
        $region59: #{tpu_custom_call.1} parent=47 // pred_region
          %v429 = vld [vmem:[%s422] sm:$0x1]
          %430 = vst [vmem:[%s407] sm:$0x1] %v429
        $region60: #{tpu_custom_call.1} parent=47 // pred_fallthru
          _
        %v431 = vld [vmem:[%s353] sm:$0xf]
        %v432 = vld [vmem:[%s353 + $0x4] sm:$0xf]
        %v433 = vld [vmem:[%s353 + $0x8] sm:$0xf]
        %v434 = vld [vmem:[%s353 + $0xc] sm:$0xf]
        %v435 = vld [vmem:[%s353 + $0x10] sm:$0xf]
        %v436 = vld [vmem:[%s353 + $0x14] sm:$0xf]
        %v437 = vld [vmem:[%s353 + $0x18] sm:$0xf]
        %v438 = vld [vmem:[%s353 + $0x1c] sm:$0xf]
        %v439 = vld [vmem:[%s353 + $0x20] sm:$0xf]
        %v440 = vld [vmem:[%s353 + $0x24] sm:$0xf]
        %v441 = vld [vmem:[%s353 + $0x28] sm:$0xf]
        %v442 = vld [vmem:[%s353 + $0x2c] sm:$0xf]
        %v443 = vld [vmem:[%s353 + $0x30] sm:$0xf]
        %v444 = vld [vmem:[%s353 + $0x34] sm:$0xf]
        %v445 = vld [vmem:[%s353 + $0x38] sm:$0xf]
        %v446 = vld [vmem:[%s353 + $0x3c] sm:$0xf]
        %v447 = vunpack.c.l.bf16 %v431
        %v448 = vunpack.c.l.bf16 %v432
        %v449 = vunpack.c.l.bf16 %v433
        %v450 = vunpack.c.l.bf16 %v434
        %v451 = vunpack.c.l.bf16 %v435
        %v452 = vunpack.c.l.bf16 %v436
        %v453 = vunpack.c.l.bf16 %v437
        %v454 = vunpack.c.l.bf16 %v438
        %v455 = vunpack.c.l.bf16 %v439
        %v456 = vunpack.c.l.bf16 %v440
        %v457 = vunpack.c.l.bf16 %v441
        %v458 = vunpack.c.l.bf16 %v442
        %v459 = vunpack.c.l.bf16 %v443
        %v460 = vunpack.c.l.bf16 %v444
        %v461 = vunpack.c.l.bf16 %v445
        %v462 = vunpack.c.l.bf16 %v446
        %v463 = vld [vmem:[%s415] sm:$0x1]
        %464 = vmatprep.subr.mxu0 0.0
        %465 = vmatpush1.msra.mxu0 %v462
        %466 = vmatprep.subr.mxu0 0.0
        %467 = vmatpush1.msra.mxu0 %v461
        %468 = vmatprep.subr.mxu0 0.0
        %469 = vmatpush1.msra.mxu0 %v460
        %470 = vmatprep.subr.mxu0 0.0
        %471 = vmatpush1.msra.mxu0 %v459
        %472 = vmatprep.subr.mxu0 0.0
        %473 = vmatpush1.msra.mxu0 %v458
        %474 = vmatprep.subr.mxu0 0.0
        %475 = vmatpush1.msra.mxu0 %v457
        %476 = vmatprep.subr.mxu0 0.0
        %477 = vmatpush1.msra.mxu0 %v456
        %478 = vmatprep.subr.mxu0 0.0
        %479 = vmatpush1.msra.mxu0 %v455
        %480 = vmatprep.subr.mxu0 0.0
        %481 = vmatpush1.msra.mxu0 %v454
        %482 = vmatprep.subr.mxu0 0.0
        %483 = vmatpush1.msra.mxu0 %v453
        %484 = vmatprep.subr.mxu0 0.0
        %485 = vmatpush1.msra.mxu0 %v452
        %486 = vmatprep.subr.mxu0 0.0
        %487 = vmatpush1.msra.mxu0 %v451
        %488 = vmatprep.subr.mxu0 0.0
        %489 = vmatpush1.msra.mxu0 %v450
        %490 = vmatprep.subr.mxu0 0.0
        %491 = vmatpush1.msra.mxu0 %v449
        %492 = vmatprep.subr.mxu0 0.0
        %493 = vmatpush1.msra.mxu0 %v448
        %494 = vmatprep.subr.mxu0 0.0
        %495 = vmatpush1.msra.mxu0 %v447
        %496 = vmatprep.subr.mxu0 0.0
        %497 = vmatpush2.msra.mxu0 0.0
        %498 = vmatprep.subr.mxu0 0.0
        %499 = vmatpush2.msra.mxu0 0.0
        %500 = vmatprep.subr.mxu0 0.0
        %501 = vmatpush2.msra.mxu0 0.0
        %502 = vmatprep.subr.mxu0 0.0
        %503 = vmatpush2.msra.mxu0 0.0
        %504 = vmatprep.subr.mxu0 0.0
        %505 = vmatpush2.msra.mxu0 0.0
        %506 = vmatprep.subr.mxu0 0.0
        %507 = vmatpush2.msra.mxu0 0.0
        %508 = vmatprep.subr.mxu0 0.0
        %509 = vmatpush2.msra.mxu0 0.0
        %510 = vmatprep.subr.mxu0 0.0
        %511 = vmatpush2.msra.mxu0 0.0
        %512 = vmatprep.subr.mxu0 0.0
        %513 = vmatpush2.msra.mxu0 0.0
        %514 = vmatprep.subr.mxu0 0.0
        %515 = vmatpush2.msra.mxu0 0.0
        %516 = vmatprep.subr.mxu0 0.0
        %517 = vmatpush2.msra.mxu0 0.0
        %518 = vmatprep.subr.mxu0 0.0
        %519 = vmatpush2.msra.mxu0 0.0
        %520 = vmatprep.subr.mxu0 0.0
        %521 = vmatpush2.msra.mxu0 0.0
        %522 = vmatprep.subr.mxu0 0.0
        %523 = vmatpush2.msra.mxu0 0.0
        %524 = vmatprep.subr.mxu0 0.0
        %525 = vmatpush2.msra.mxu0 0.0
        %526 = vmatprep.subr.mxu0 0.0
        %527 = vmatpush2.msra.mxu0 0.0
        %528 = vmatprep.mubr.f32.mxu0 0.0
        %529 = vmatmul.mubr.f32.gmra.mxu0 %v424
        %v530 = vpop.f32.mrf.mxu0
        %v531 = vadd.f32 %v463, %v530
        %v532 = vpop.f32.mrf.mxu0
        %533 = vdwg.mxu0
        %v534 = vmax.f32 %v531, 0.0
        %v535 = vld [vmem:[%s407] sm:$0x1]
        %v536 = vld [vmem:[%s362] sm:$0xf]
        %v537 = vld [vmem:[%s362 + $0x4] sm:$0xf]
        %v538 = vld [vmem:[%s362 + $0x8] sm:$0xf]
        %v539 = vld [vmem:[%s362 + $0xc] sm:$0xf]
        %v540 = vld [vmem:[%s362 + $0x10] sm:$0xf]
        %v541 = vld [vmem:[%s362 + $0x14] sm:$0xf]
        %v542 = vld [vmem:[%s362 + $0x18] sm:$0xf]
        %v543 = vld [vmem:[%s362 + $0x1c] sm:$0xf]
        %v544 = vld [vmem:[%s362 + $0x20] sm:$0xf]
        %v545 = vld [vmem:[%s362 + $0x24] sm:$0xf]
        %v546 = vld [vmem:[%s362 + $0x28] sm:$0xf]
        %v547 = vld [vmem:[%s362 + $0x2c] sm:$0xf]
        %v548 = vld [vmem:[%s362 + $0x30] sm:$0xf]
        %v549 = vld [vmem:[%s362 + $0x34] sm:$0xf]
        %v550 = vld [vmem:[%s362 + $0x38] sm:$0xf]
        %v551 = vld [vmem:[%s362 + $0x3c] sm:$0xf]
        %v552 = vunpack.c.l.bf16 %v536
        %v553 = vunpack.c.l.bf16 %v537
        %v554 = vunpack.c.l.bf16 %v538
        %v555 = vunpack.c.l.bf16 %v539
        %v556 = vunpack.c.l.bf16 %v540
        %v557 = vunpack.c.l.bf16 %v541
        %v558 = vunpack.c.l.bf16 %v542
        %v559 = vunpack.c.l.bf16 %v543
        %v560 = vunpack.c.l.bf16 %v544
        %v561 = vunpack.c.l.bf16 %v545
        %v562 = vunpack.c.l.bf16 %v546
        %v563 = vunpack.c.l.bf16 %v547
        %v564 = vunpack.c.l.bf16 %v548
        %v565 = vunpack.c.l.bf16 %v549
        %v566 = vunpack.c.l.bf16 %v550
        %v567 = vunpack.c.l.bf16 %v551
        %568 = vmatprep.subr.mxu0 0.0
        %569 = vmatpush1.msra.mxu0 %v567
        %570 = vmatprep.subr.mxu0 0.0
        %571 = vmatpush1.msra.mxu0 %v566
        %572 = vmatprep.subr.mxu0 0.0
        %573 = vmatpush1.msra.mxu0 %v565
        %574 = vmatprep.subr.mxu0 0.0
        %575 = vmatpush1.msra.mxu0 %v564
        %576 = vmatprep.subr.mxu0 0.0
        %577 = vmatpush1.msra.mxu0 %v563
        %578 = vmatprep.subr.mxu0 0.0
        %579 = vmatpush1.msra.mxu0 %v562
        %580 = vmatprep.subr.mxu0 0.0
        %581 = vmatpush1.msra.mxu0 %v561
        %582 = vmatprep.subr.mxu0 0.0
        %583 = vmatpush1.msra.mxu0 %v560
        %584 = vmatprep.subr.mxu0 0.0
        %585 = vmatpush1.msra.mxu0 %v559
        %586 = vmatprep.subr.mxu0 0.0
        %587 = vmatpush1.msra.mxu0 %v558
        %588 = vmatprep.subr.mxu0 0.0
        %589 = vmatpush1.msra.mxu0 %v557
        %590 = vmatprep.subr.mxu0 0.0
        %591 = vmatpush1.msra.mxu0 %v556
        %592 = vmatprep.subr.mxu0 0.0
        %593 = vmatpush1.msra.mxu0 %v555
        %594 = vmatprep.subr.mxu0 0.0
        %595 = vmatpush1.msra.mxu0 %v554
        %596 = vmatprep.subr.mxu0 0.0
        %597 = vmatpush1.msra.mxu0 %v553
        %598 = vmatprep.subr.mxu0 0.0
        %599 = vmatpush1.msra.mxu0 %v552
        %600 = vmatprep.subr.mxu0 0.0
        %601 = vmatpush2.msra.mxu0 0.0
        %602 = vmatprep.subr.mxu0 0.0
        %603 = vmatpush2.msra.mxu0 0.0
        %604 = vmatprep.subr.mxu0 0.0
        %605 = vmatpush2.msra.mxu0 0.0
        %606 = vmatprep.subr.mxu0 0.0
        %607 = vmatpush2.msra.mxu0 0.0
        %608 = vmatprep.subr.mxu0 0.0
        %609 = vmatpush2.msra.mxu0 0.0
        %610 = vmatprep.subr.mxu0 0.0
        %611 = vmatpush2.msra.mxu0 0.0
        %612 = vmatprep.subr.mxu0 0.0
        %613 = vmatpush2.msra.mxu0 0.0
        %614 = vmatprep.subr.mxu0 0.0
        %615 = vmatpush2.msra.mxu0 0.0
        %616 = vmatprep.subr.mxu0 0.0
        %617 = vmatpush2.msra.mxu0 0.0
        %618 = vmatprep.subr.mxu0 0.0
        %619 = vmatpush2.msra.mxu0 0.0
        %620 = vmatprep.subr.mxu0 0.0
        %621 = vmatpush2.msra.mxu0 0.0
        %622 = vmatprep.subr.mxu0 0.0
        %623 = vmatpush2.msra.mxu0 0.0
        %624 = vmatprep.subr.mxu0 0.0
        %625 = vmatpush2.msra.mxu0 0.0
        %626 = vmatprep.subr.mxu0 0.0
        %627 = vmatpush2.msra.mxu0 0.0
        %628 = vmatprep.subr.mxu0 0.0
        %629 = vmatpush2.msra.mxu0 0.0
        %630 = vmatprep.subr.mxu0 0.0
        %631 = vmatpush2.msra.mxu0 0.0
        %632 = vmatprep.mubr.f32.mxu0 0.0
        %633 = vmatmul.mubr.f32.gmra.mxu0 %v534
        %v634 = vpop.f32.mrf.mxu0
        %v635 = vadd.f32 0.0, %v634
        %v636 = vpop.f32.mrf.mxu0
        %637 = vdwg.mxu0
        %v638 = vadd.f32 %v535, %v635
        %639 = vst [vmem:[%s407] sm:$0x1] %v638
        // Predicated region
        $region61: #{tpu_custom_call.1} parent=47 // pred_check
          %p640 = pneg %p425
        $region62: #{tpu_custom_call.1} parent=47 // pred_check_branch
          %642 = sbr.rel (%p640) target = $region64
        $region63: #{tpu_custom_call.1} parent=47 // pred_region
          %v643 = vld [vmem:[%s2] sm:$0xff]
          %v644 = vld [vmem:[%s2 + $0x8] sm:$0xff]
          %v645 = vld [vmem:[%s2 + $0x10] sm:$0xff]
          %v646 = vld [vmem:[%s2 + $0x18] sm:$0xff]
          %v647 = vld [vmem:[%s2 + $0x20] sm:$0xff]
          %v648 = vld [vmem:[%s2 + $0x28] sm:$0xff]
          %v649 = vld [vmem:[%s2 + $0x30] sm:$0xff]
          %v650 = vld [vmem:[%s2 + $0x38] sm:$0xff]
          %v651 = vld [vmem:[%s2 + $0x40] sm:$0xff]
          %v652 = vld [vmem:[%s2 + $0x48] sm:$0xff]
          %v653 = vld [vmem:[%s2 + $0x50] sm:$0xff]
          %v654 = vld [vmem:[%s2 + $0x58] sm:$0xff]
          %v655 = vld [vmem:[%s2 + $0x60] sm:$0xff]
          %v656 = vld [vmem:[%s2 + $0x68] sm:$0xff]
          %v657 = vld [vmem:[%s2 + $0x70] sm:$0xff]
          %v658 = vld [vmem:[%s2 + $0x78] sm:$0xff]
          %v659 = vld [vmem:[%s3] sm:$0x1]
          %660 = vmatprep.subr.mxu0 0.0
          %661 = vmatpush1.msra.mxu0 %v658
          %662 = vmatprep.subr.mxu0 0.0
          %663 = vmatpush1.msra.mxu0 %v657
          %664 = vmatprep.subr.mxu0 0.0
          %665 = vmatpush1.msra.mxu0 %v656
          %666 = vmatprep.subr.mxu0 0.0
          %667 = vmatpush1.msra.mxu0 %v655
          %668 = vmatprep.subr.mxu0 0.0
          %669 = vmatpush1.msra.mxu0 %v654
          %670 = vmatprep.subr.mxu0 0.0
          %671 = vmatpush1.msra.mxu0 %v653
          %672 = vmatprep.subr.mxu0 0.0
          %673 = vmatpush1.msra.mxu0 %v652
          %674 = vmatprep.subr.mxu0 0.0
          %675 = vmatpush1.msra.mxu0 %v651
          %676 = vmatprep.subr.mxu0 0.0
          %677 = vmatpush1.msra.mxu0 %v650
          %678 = vmatprep.subr.mxu0 0.0
          %679 = vmatpush1.msra.mxu0 %v649
          %680 = vmatprep.subr.mxu0 0.0
          %681 = vmatpush1.msra.mxu0 %v648
          %682 = vmatprep.subr.mxu0 0.0
          %683 = vmatpush1.msra.mxu0 %v647
          %684 = vmatprep.subr.mxu0 0.0
          %685 = vmatpush1.msra.mxu0 %v646
          %686 = vmatprep.subr.mxu0 0.0
          %687 = vmatpush1.msra.mxu0 %v645
          %688 = vmatprep.subr.mxu0 0.0
          %689 = vmatpush1.msra.mxu0 %v644
          %690 = vmatprep.subr.mxu0 0.0
          %691 = vmatpush1.msra.mxu0 %v643
          %692 = vmatprep.subr.mxu0 0.0
          %693 = vmatpush2.msra.mxu0 0.0
          %694 = vmatprep.subr.mxu0 0.0
          %695 = vmatpush2.msra.mxu0 0.0
          %696 = vmatprep.subr.mxu0 0.0
          %697 = vmatpush2.msra.mxu0 0.0
          %698 = vmatprep.subr.mxu0 0.0
          %699 = vmatpush2.msra.mxu0 0.0
          %700 = vmatprep.subr.mxu0 0.0
          %701 = vmatpush2.msra.mxu0 0.0
          %702 = vmatprep.subr.mxu0 0.0
          %703 = vmatpush2.msra.mxu0 0.0
          %704 = vmatprep.subr.mxu0 0.0
          %705 = vmatpush2.msra.mxu0 0.0
          %706 = vmatprep.subr.mxu0 0.0
          %707 = vmatpush2.msra.mxu0 0.0
          %708 = vmatprep.subr.mxu0 0.0
          %709 = vmatpush2.msra.mxu0 0.0
          %710 = vmatprep.subr.mxu0 0.0
          %711 = vmatpush2.msra.mxu0 0.0
          %712 = vmatprep.subr.mxu0 0.0
          %713 = vmatpush2.msra.mxu0 0.0
          %714 = vmatprep.subr.mxu0 0.0
          %715 = vmatpush2.msra.mxu0 0.0
          %716 = vmatprep.subr.mxu0 0.0
          %717 = vmatpush2.msra.mxu0 0.0
          %718 = vmatprep.subr.mxu0 0.0
          %719 = vmatpush2.msra.mxu0 0.0
          %720 = vmatprep.subr.mxu0 0.0
          %721 = vmatpush2.msra.mxu0 0.0
          %722 = vmatprep.subr.mxu0 0.0
          %723 = vmatpush2.msra.mxu0 0.0
          %724 = vmatprep.mubr.f32.mxu0 0.0
          %725 = vmatmul.mubr.f32.gmra.mxu0 %v424
          %v726 = vpop.f32.mrf.mxu0
          %v727 = vadd.f32 %v659, %v726
          %v728 = vpop.f32.mrf.mxu0
          %729 = vdwg.mxu0
          %vm730 = vcmask 24576
          %v731 = vsel %vm730, %v727, -inf
          %732 = vmax.xlane.f32.xlu0 %v731
          %v733 = vpop.xlane.xlu0 %732
          %v734 = vsub.f32 %v727, %v733
          %v735 = vmul.f32 %v734, 1.442695
          %v736 = vpow.pop %v735
          %v737 = vsel %vm730, %v736, 0.0
          %738 = vadd.xlane.f32.xlu0 %v737
          %v739 = vpop.xlane.xlu0 %738
          %v740 = vrcp.pop %v739
          %v741 = vmul.f32 %v736, %v740
          %v742 = vsel %vm730, %v741, -inf
          %743 = vmax.xlane.f32.xlu0 %v742
          %v744 = vpop.xlane.xlu0 %743
          %v745 = vlaneseq
          %v746 = vand.u32 %v745, 127
          %vm747 = vcmp.eq.f32.partialorder %v741, %v744
          %v748 = vsel %vm747, %v746, 1073741824
          %v749 = vsel %vm730, %v748, 2147483647
          %v750 = vand.u32 %v749, 65535
          %v751 = vshra.s32 %v749, 16
          %v752 = vcvt.s32.f32 %v750
          %v753 = vcvt.s32.f32 %v751
          %754 = vmin.xlane.f32.xlu0 %v753
          %v755 = vpop.xlane.xlu0 %754
          %vm756 = vcmp.eq.f32.partialorder %v753, %v755
          %v757 = vsel %vm756, %v752, inf
          %758 = vmin.xlane.f32.xlu0 %v757
          %v759 = vpop.xlane.xlu0 %758
          %v760 = vcvt.f32.s32 %v759
          %v761 = vcvt.f32.s32 %v755
          %v762 = vshll.u32 %v761, 16
          %v763 = vadd.s32 %v762, %v760
          %vm764 = vcmp.eq.s32.totalorder %v746, %v763
          %v765 = vsel %vm764, -inf, %v741
          %v766 = vsel %vm730, %v765, -inf
          %767 = vmax.xlane.f32.xlu0 %v766
          %v768 = vpop.xlane.xlu0 %767
          %p769 = scmp.eq.s32.totalorder %s38, 0
          %s770 = scalar_select %p769, 1, 0
          %v771 = vstv %s770
          %vm772 = vcmp.eq.s32.totalorder %v771, 1
          %v773 = vsel %vm772, %v744, %v768
          %v774 = vld [vmem:[%s407] sm:$0x1]
          %v775 = vmul.f32 %v774, %v773
          %776 = vst [vmem:[%s407] sm:$0x1] %v775
        $region64: #{tpu_custom_call.1} parent=47 // pred_fallthru
          _
        %s777 = sand.u32 %s235, 1
        %s778 = scalar_lea.sflag [#allocation6], %s777
        %s779 = sand.u32 %s235, 1
        %s780 = scalar_lea.vmem [#allocation9], %s779
        // Predicated region
        $region65: #{tpu_custom_call.1} parent=47 // pred_check
          %p781 = pneg %p245
        $region66: #{tpu_custom_call.1} parent=47 // pred_check_branch
          %783 = sbr.rel (%p781) target = $region68
        $region67: #{tpu_custom_call.1} parent=47 // pred_region
          %s785 = ssub.s32 16, 16
          %786 = vsyncadd %s778, %s785
          %s787 = smul.addr %s38, 16
          %s788 = scalar_lea.hbm %s8, %s787
          %s790 = sshll.u32 %s780, 4
          %s791 = int_to_ptr.vmem [resolvable:$true] %s790
          %793 = dma.vmem_to_hbm [thread:$0]  %s791, 16, %s788, %s778
        $region68: #{tpu_custom_call.1} parent=47 // pred_fallthru
          _
      $region48: #{tpu_custom_call.1} parent=5 // pred_fallthru
        _
      %p794 = scmp.le.s32.totalorder 2, %s29
      // Predicated region
      $region69: #{tpu_custom_call.1} parent=5 // pred_check
        %p795 = pneg %p794
      $region70: #{tpu_custom_call.1} parent=5 // pred_check_branch
        %797 = sbr.rel (%p795) target = $region72
      $region71: #{tpu_custom_call.1} parent=5 // pred_region
        %s798 = ssub.s32 %s29, 2
        // Predicated region
        $region73: #{tpu_custom_call.1} parent=71 // pred_check
          %p799 = pneg %p251
        $region74: #{tpu_custom_call.1} parent=71 // pred_check_branch
          %801 = sbr.rel (%p799) target = $region76
        $region75: #{tpu_custom_call.1} parent=71 // pred_region
          %s802 = sand.u32 %s236, 1
          %s803 = scalar_lea.sflag [#allocation6], %s802
          %s804 = sand.u32 %s236, 1
          %s805 = scalar_lea.vmem [#allocation9], %s804
          %806 = dma.done %s803, 16
        $region76: #{tpu_custom_call.1} parent=71 // pred_fallthru
          _
      $region72: #{tpu_custom_call.1} parent=5 // pred_fallthru
        _
    $region6: #{tpu_custom_call.1} parent=1 // loop_footer
      %s33 = sadd.s32 1, %s29
    $region7: #{tpu_custom_call.1} parent=1 // loop_footer_branch
      %28 = sbr.rel target = $region3
    $region8: #{tpu_custom_call.1} parent=1 // loop_exit
      _
    %807 = vsyncpa [#allocation5], 1
    %s808 = scalar_lea.sflag [#allocation5], 1
    %809 = vsyncpa %s808, 1
    %810 = vsyncpa [#allocation8], 1
    %s811 = scalar_lea.sflag [#allocation8], 1
    %812 = vsyncpa %s811, 1
    %813 = vsyncpa [#allocation6], 1
    %s814 = scalar_lea.sflag [#allocation6], 1
    %815 = vsyncpa %s814, 1

</llo_original>
